<compile_context>
chip_gen: v7x
topology: tpu7x:2x2x1
jax: 0.10.0
libtpu: 0.0.40
codegen_flags: <defaults>
</compile_context>

<pallas_src>
import functools

import jax
import jax.numpy as jnp
from jax import lax
from jax.experimental import pallas as pl
from jax.experimental.pallas import tpu as pltpu

LANES = 128
MAX_BLOCK_ROWS = 1024   # 1024x128 f32 tile = 512 KiB; 2 inputs x 2 bufs = 2 MiB VMEM
ROW_ALIGN = 32          # sublane alignment that covers f32 (8), bf16 (16), int8 (32)


def _round_up(x, m):
    return (x + m - 1) // m * m


def _pow_gamma(x, gamma):
    """x**gamma, avoiding the transcendental pow for small integer gamma."""
    g = float(gamma)
    if g == 0.0:
        return jnp.ones_like(x)
    if g.is_integer() and 0 < g <= 8:
        out = x
        for _ in range(int(g) - 1):
            out = out * x
        return out
    return x ** g  # fractional gamma: fall back to pow


def _focal_kernel(x_ref, t_ref, out_ref, *, scale, gamma, n_elem, block_rows,
                  needs_mask):
    i = pl.program_id(0)

    x = x_ref[...].astype(jnp.float32)
    t = t_ref[...].astype(jnp.float32)

    # numerically stable binary_cross_entropy_with_logits (reduction='none')
    bce = jnp.maximum(x, 0.0) - x * t + jnp.log1p(jnp.exp(-jnp.abs(x)))
    pt = jnp.exp(-bce)
    focal = scale * _pow_gamma(1.0 - pt, gamma) * bce

    def _write_partial(f):
        # reduce (block_rows, 128) -> (8, 128): sums across whole vregs (VPU adds)
        out_ref[0] = jnp.sum(f.reshape(block_rows // 8, 8, LANES), axis=0)

    if needs_mask:
        # Padding lives entirely in the last block; interior tiles skip masking.
        last = pl.num_programs(0) - 1

        @pl.when(i < last)
        def _():
            _write_partial(focal)

        @pl.when(i == last)
        def _():
            base = i * (block_rows * LANES)
            row = lax.broadcasted_iota(jnp.int32, (block_rows, LANES), 0)
            col = lax.broadcasted_iota(jnp.int32, (block_rows, LANES), 1)
            idx = base + row * LANES + col
            _write_partial(jnp.where(idx < n_elem, focal, 0.0))
    else:
        _write_partial(focal)


def focal_loss(logits, targets, *, alpha=1.0, gamma=2.0, class_weights=None,
               reduction="mean"):
    """Pallas TPU implementation of FocalLoss.forward.

    `logits`/`targets` may be any (identical) shape and dtype; result is a
    scalar.  reduction="mean" -> mean, reduction=None -> sum (matches the
    PyTorch module, whose assert only allows 'mean' or None).
    """
    assert reduction in ("mean", None)
    # TODO(synk): only scalar class_weights supported (PyTorch default is 1.0);
    # tensor-valued class_weights would need a broadcast-shape convention.
    cw = 1.0 if class_weights is None else float(class_weights)

    n_elem = logits.size
    x_flat = jnp.ravel(logits)            # keep native dtype; upcast in-kernel
    t_flat = jnp.ravel(targets)

    rows = pl.cdiv(n_elem, LANES)
    block_rows = min(MAX_BLOCK_ROWS, _round_up(rows, ROW_ALIGN))
    padded_rows = _round_up(rows, block_rows)
    padded = padded_rows * LANES
    pad = padded - n_elem
    if pad:
        x_flat = jnp.pad(x_flat, (0, pad))
        t_flat = jnp.pad(t_flat, (0, pad))

    x2 = x_flat.reshape(padded_rows, LANES)
    t2 = t_flat.reshape(padded_rows, LANES)

    num_blocks = padded_rows // block_rows
    kernel = functools.partial(
        _focal_kernel,
        scale=float(alpha) * cw,
        gamma=gamma,
        n_elem=int(n_elem),
        block_rows=block_rows,
        needs_mask=(pad > 0),
    )

    in_blk = pl.BlockSpec((block_rows, LANES), lambda i: (i, 0))
    partials = pl.pallas_call(
        kernel,
        out_shape=jax.ShapeDtypeStruct((num_blocks, 8, LANES), jnp.float32),
        grid_spec=pltpu.PrefetchScalarGridSpec(
            num_scalar_prefetch=0,
            grid=(num_blocks,),
            in_specs=[in_blk, in_blk],
            out_specs=pl.BlockSpec((1, 8, LANES), lambda i: (i, 0, 0)),
        ),
        compiler_params=pltpu.CompilerParams(
            dimension_semantics=("parallel",)),
    )(x2, t2)

    total = jnp.sum(partials)             # tiny reduce over (num_blocks, 8, 128)
    if reduction == "mean":
        total = total / jnp.float32(n_elem)
    return total


def _focal_loss_ref(logits, targets, alpha=1.0, gamma=2.0, class_weights=1.0,
                    reduction="mean"):
    x = logits.astype(jnp.float32)
    t = targets.astype(jnp.float32)
    bce = jnp.maximum(x, 0.0) - x * t + jnp.log1p(jnp.exp(-jnp.abs(x)))
    pt = jnp.exp(-bce)
    fl = alpha * (1.0 - pt) ** gamma * bce * class_weights
    return jnp.mean(fl) if reduction == "mean" else jnp.sum(fl)


if __name__ == "__main__":
    key = jax.random.PRNGKey(0)
    k1, k2 = jax.random.split(key)
    # segmentation-style logits/targets, NCHW
    x = jax.random.normal(k1, (2, 4, 16, 16), dtype=jnp.float32)
    tgt = (jax.random.uniform(k2, (2, 4, 16, 16)) > 0.5).astype(jnp.float32)

    loss_mean = focal_loss(x, tgt, alpha=1.0, gamma=2.0, reduction="mean")
    loss_sum = focal_loss(x, tgt, alpha=1.0, gamma=2.0, reduction=None)
    jax.block_until_ready((loss_mean, loss_sum))

    ref_mean = _focal_loss_ref(x, tgt, reduction="mean")
    ref_sum = _focal_loss_ref(x, tgt, reduction=None)
    assert jnp.allclose(loss_mean, ref_mean, rtol=1e-5, atol=1e-6), (loss_mean, ref_mean)
    assert jnp.allclose(loss_sum, ref_sum, rtol=1e-5, atol=1e-5), (loss_sum, ref_sum)
    print("KERNEL_OK")
</pallas_src>

<mosaic_0001>
module attributes {stable_mosaic.version = 11 : i64} {
  func.func @_focal_kernel(%arg0: i32, %arg1: memref<32x128xf32, #tpu.memory_space<vmem>>, %arg2: memref<32x128xf32, #tpu.memory_space<vmem>>, %arg3: memref<1x8x128xf32, #tpu.memory_space<vmem>>) attributes {dimension_semantics = [#tpu.dimension_semantics<parallel>], iteration_bounds = array<i64: 1>, scalar_prefetch = 0 : i64, scratch_operands = 0 : i64, tpu.core_type = #tpu.core_type<tc>, window_params = [{transform_indices = @transform_0, window_bounds = array<i64: 32, 128>}, {transform_indices = @transform_1, window_bounds = array<i64: 32, 128>}, {transform_indices = @transform_2, window_bounds = array<i64: 1, 8, 128>}]} {
    %c0 = arith.constant 0 : index
    %c0_0 = arith.constant 0 : index
    %0 = vector.load %arg1[%c0, %c0_0] : memref<32x128xf32, #tpu.memory_space<vmem>>, vector<32x128xf32>
    %c0_1 = arith.constant 0 : index
    %c0_2 = arith.constant 0 : index
    %1 = vector.load %arg2[%c0_1, %c0_2] : memref<32x128xf32, #tpu.memory_space<vmem>>, vector<32x128xf32>
    %cst = arith.constant 0.000000e+00 : f32
    %2 = vector.broadcast %cst : f32 to vector<32x128xf32>
    %3 = arith.maximumf %0, %2 : vector<32x128xf32>
    %4 = arith.mulf %0, %1 : vector<32x128xf32>
    %5 = arith.subf %3, %4 : vector<32x128xf32>
    %6 = math.absf %0 : vector<32x128xf32>
    %cst_3 = arith.constant 0.000000e+00 : f32
    %7 = vector.broadcast %cst_3 : f32 to vector<32x128xf32>
    %8 = arith.subf %7, %6 : vector<32x128xf32>
    %9 = math.exp %8 : vector<32x128xf32>
    %10 = math.log1p %9 : vector<32x128xf32>
    %11 = arith.addf %5, %10 : vector<32x128xf32>
    %cst_4 = arith.constant 0.000000e+00 : f32
    %12 = vector.broadcast %cst_4 : f32 to vector<32x128xf32>
    %13 = arith.subf %12, %11 : vector<32x128xf32>
    %14 = math.exp %13 : vector<32x128xf32>
    %cst_5 = arith.constant 1.000000e+00 : f32
    %15 = vector.broadcast %cst_5 : f32 to vector<32x128xf32>
    %16 = arith.subf %15, %14 : vector<32x128xf32>
    %17 = arith.mulf %16, %16 : vector<32x128xf32>
    %cst_6 = arith.constant 1.000000e+00 : f32
    %18 = vector.broadcast %cst_6 : f32 to vector<32x128xf32>
    %19 = arith.mulf %18, %17 : vector<32x128xf32>
    %20 = arith.mulf %19, %11 : vector<32x128xf32>
    %c0_i32 = arith.constant 0 : i32
    %21 = arith.cmpi slt, %arg0, %c0_i32 : i32
    %22 = arith.extui %21 : i1 to i32
    %c0_i32_7 = arith.constant 0 : i32
    %23 = arith.cmpi ne, %22, %c0_i32_7 : i32
    scf.if %23 {
      %27 = vector.shape_cast %20 : vector<32x128xf32> to vector<4x8x128xf32>
      %cst_10 = arith.constant dense<0.000000e+00> : vector<8x128xf32>
      %28 = vector.multi_reduction <add>, %27, %cst_10 [0] : vector<4x8x128xf32> to vector<8x128xf32>
      %c0_11 = arith.constant 0 : index
      %c0_12 = arith.constant 0 : index
      %c0_13 = arith.constant 0 : index
      %29 = vector.load %arg3[%c0_11, %c0_12, %c0_13] : memref<1x8x128xf32, #tpu.memory_space<vmem>>, vector<1x8x128xf32>
      %30 = vector.shape_cast %29 : vector<1x8x128xf32> to vector<8x128xf32>
      %31 = vector.shape_cast %28 : vector<8x128xf32> to vector<1x8x128xf32>
      tpu.vector_store %arg3[%c0_11, %c0_12, %c0_13], %31 {strides = array<i32>} : memref<1x8x128xf32, #tpu.memory_space<vmem>>, vector<1x8x128xf32>,
    } else {
    }
    %c0_i32_8 = arith.constant 0 : i32
    %24 = arith.cmpi eq, %arg0, %c0_i32_8 : i32
    %25 = arith.extui %24 : i1 to i32
    %c0_i32_9 = arith.constant 0 : i32
    %26 = arith.cmpi ne, %25, %c0_i32_9 : i32
    scf.if %26 {
      %c4096_i32 = arith.constant 4096 : i32
      %27 = arith.muli %arg0, %c4096_i32 : i32
      %28 = tpu.iota {dimensions = array<i32: 0>} : vector<32x128xi32>
      %29 = tpu.iota {dimensions = array<i32: 1>} : vector<32x128xi32>
      %c128_i32 = arith.constant 128 : i32
      %30 = vector.broadcast %c128_i32 : i32 to vector<32x128xi32>
      %31 = arith.muli %28, %30 : vector<32x128xi32>
      %32 = vector.broadcast %27 : i32 to vector<32x128xi32>
      %33 = arith.addi %32, %31 : vector<32x128xi32>
      %34 = arith.addi %33, %29 : vector<32x128xi32>
      %c2048_i32 = arith.constant 2048 : i32
      %35 = vector.broadcast %c2048_i32 : i32 to vector<32x128xi32>
      %36 = arith.cmpi slt, %34, %35 : vector<32x128xi32>
      %cst_10 = arith.constant 0.000000e+00 : f32
      %37 = vector.broadcast %cst_10 : f32 to vector<32x128xf32>
      %38 = arith.select %36, %20, %37 : vector<32x128xi1>, vector<32x128xf32>
      %39 = vector.shape_cast %38 : vector<32x128xf32> to vector<4x8x128xf32>
      %cst_11 = arith.constant dense<0.000000e+00> : vector<8x128xf32>
      %40 = vector.multi_reduction <add>, %39, %cst_11 [0] : vector<4x8x128xf32> to vector<8x128xf32>
      %c0_12 = arith.constant 0 : index
      %c0_13 = arith.constant 0 : index
      %c0_14 = arith.constant 0 : index
      %41 = vector.load %arg3[%c0_12, %c0_13, %c0_14] : memref<1x8x128xf32, #tpu.memory_space<vmem>>, vector<1x8x128xf32>
      %42 = vector.shape_cast %41 : vector<1x8x128xf32> to vector<8x128xf32>
      %43 = vector.shape_cast %40 : vector<8x128xf32> to vector<1x8x128xf32>
      tpu.vector_store %arg3[%c0_12, %c0_13, %c0_14], %43 {strides = array<i32>} : memref<1x8x128xf32, #tpu.memory_space<vmem>>, vector<1x8x128xf32>,
    } else {
    }
    return
  }
  func.func @transform_0(%arg0: i32) -> (i32, i32) {
    %c0_i32 = arith.constant 0 : i32
    %c0_i32_0 = arith.constant 0 : i32
    return %arg0, %c0_i32 : i32, i32
  }
  func.func @transform_1(%arg0: i32) -> (i32, i32) {
    %c0_i32 = arith.constant 0 : i32
    %c0_i32_0 = arith.constant 0 : i32
    return %arg0, %c0_i32 : i32, i32
  }
  func.func @transform_2(%arg0: i32) -> (i32, i32, i32) {
    %c0_i32 = arith.constant 0 : i32
    %c0_i32_0 = arith.constant 0 : i32
    %c0_i32_1 = arith.constant 0 : i32
    return %arg0, %c0_i32, %c0_i32_0 : i32, i32, i32
  }
}

</mosaic_0001>

<llo_original>
// kernel: tpu_custom_call.1
$region0: #{tpu_custom_call.1}
  #allocation0 [shape = 'u32[]', space=smem, size = 0x4, offset = 0x4, fixed_abs, tag = 'smem constant byte address 0x4 - core index']
  #allocation1 [shape = 'u32[144,128]{1,0:T(1,128)}', space=vmem, size = 0x12000, scoped, tag = 'internal scratch']
  %s0 = inlined_call_operand.hbm [shape: f32[32,128], index: 0, kind: input, shape index: {}]
  %s1 = inlined_call_operand.hbm [shape: f32[32,128], index: 1, kind: input, shape index: {}]
  %s2 = inlined_call_operand.hbm [shape: f32[1,8,128], index: 2, kind: output, shape index: {}]
  %s3 = sld [smem:[#allocation0]]
  $region34: #{tpu_custom_call.1} parent=0
    _
  %s5 = ssub.s32 1, %s3
  %s6 = scalar_select 0, %s5, %s3
  $region1: #{tpu_custom_call.1} parent=0
    #allocation2 [shape = 'u8[16384]{0}', space=vmem, size = 0x4000, scoped, tag = 'input window, operand 0, single buffered']
    #allocation3 [shape = 's32[1]{0}', space=sflag, size = 0x4, scoped, tag = 'scoped memory for tpu_custom_call.1']
    #allocation4 [shape = 's32[1]{0}', space=sflag, size = 0x4, scoped, tag = 'scoped memory for tpu_custom_call.1']
    #allocation5 [shape = 'u8[16384]{0}', space=vmem, size = 0x4000, scoped, tag = 'input window, operand 1, single buffered']
    #allocation6 [shape = 's32[1]{0}', space=sflag, size = 0x4, scoped, tag = 'scoped memory for tpu_custom_call.1']
    #allocation7 [shape = 'u8[4096]{0}', space=vmem, size = 0x1000, scoped, tag = 'output window, operand 0, single buffered']
    %7 = vsyncpa [#allocation3], 0
    %8 = vsyncpa [#allocation6], 0
    %9 = vsyncpa [#allocation4], 0
    // Predicated region
    $region2: #{tpu_custom_call.1} parent=1 // pred_check
      _
    $region3: #{tpu_custom_call.1} parent=1 // pred_check_branch
      %11 = sbr.rel (0) target = $region5
    $region4: #{tpu_custom_call.1} parent=1 // pred_region
      %s13 = ssub.s32 512, 512
      %14 = vsyncadd [#allocation3], %s13
      %s15 = sshll.u32 [#allocation2], 4
      %s16 = int_to_ptr.vmem [resolvable:$true] %s15
      %21 = dma.hbm_to_vmem [thread:$0]  %s0, 512, %s16, [#allocation3], 128, 128, 8
    $region5: #{tpu_custom_call.1} parent=1 // pred_fallthru
      _
    // Predicated region
    $region6: #{tpu_custom_call.1} parent=1 // pred_check
      _
    $region7: #{tpu_custom_call.1} parent=1 // pred_check_branch
      %23 = sbr.rel (0) target = $region9
    $region8: #{tpu_custom_call.1} parent=1 // pred_region
      %s25 = ssub.s32 512, 512
      %26 = vsyncadd [#allocation6], %s25
      %s27 = sshll.u32 [#allocation5], 4
      %s28 = int_to_ptr.vmem [resolvable:$true] %s27
      %33 = dma.hbm_to_vmem [thread:$0]  %s1, 512, %s28, [#allocation6], 128, 128, 8
    $region9: #{tpu_custom_call.1} parent=1 // pred_fallthru
      _
    // Predicated region
    $region10: #{tpu_custom_call.1} parent=1 // pred_check
      _
    $region11: #{tpu_custom_call.1} parent=1 // pred_check_branch
      %35 = sbr.rel (0) target = $region13
    $region12: #{tpu_custom_call.1} parent=1 // pred_region
      %36 = dma.done [#allocation3], 512
    $region13: #{tpu_custom_call.1} parent=1 // pred_fallthru
      _
    // Predicated region
    $region14: #{tpu_custom_call.1} parent=1 // pred_check
      _
    $region15: #{tpu_custom_call.1} parent=1 // pred_check_branch
      %38 = sbr.rel (0) target = $region17
    $region16: #{tpu_custom_call.1} parent=1 // pred_region
      %39 = dma.done [#allocation6], 512
    $region17: #{tpu_custom_call.1} parent=1 // pred_fallthru
      _
    %v40 = vld [vmem:[#allocation2] sm:$0xff]
    %v41 = vld [vmem:[#allocation2 + $0x8] sm:$0xff]
    %v42 = vld [vmem:[#allocation2 + $0x10] sm:$0xff]
    %v43 = vld [vmem:[#allocation2 + $0x18] sm:$0xff]
    %v44 = vld [vmem:[#allocation5] sm:$0xff]
    %v45 = vld [vmem:[#allocation5 + $0x8] sm:$0xff]
    %v46 = vld [vmem:[#allocation5 + $0x10] sm:$0xff]
    %v47 = vld [vmem:[#allocation5 + $0x18] sm:$0xff]
    %v48 = vmax.f32 %v40, 0.0
    %v49 = vmax.f32 %v41, 0.0
    %v50 = vmax.f32 %v42, 0.0
    %v51 = vmax.f32 %v43, 0.0
    %v52 = vmul.f32 %v40, %v44
    %v53 = vmul.f32 %v41, %v45
    %v54 = vmul.f32 %v42, %v46
    %v55 = vmul.f32 %v43, %v47
    %v56 = vsub.f32 %v48, %v52
    %v57 = vsub.f32 %v49, %v53
    %v58 = vsub.f32 %v50, %v54
    %v59 = vsub.f32 %v51, %v55
    %v60 = vand.u32 2147483647, %v40
    %v61 = vand.u32 2147483647, %v41
    %v62 = vand.u32 2147483647, %v42
    %v63 = vand.u32 2147483647, %v43
    %v64 = vsub.f32 0.0, %v60
    %v65 = vsub.f32 0.0, %v61
    %v66 = vsub.f32 0.0, %v62
    %v67 = vsub.f32 0.0, %v63
    %v68 = vmul.f32 %v64, 1.442695
    %v69 = vpow.pop %v68
    %v70 = vmul.f32 %v65, 1.442695
    %v71 = vpow.pop %v70
    %v72 = vmul.f32 %v66, 1.442695
    %v73 = vpow.pop %v72
    %v74 = vmul.f32 %v67, 1.442695
    %v75 = vpow.pop %v74
    %v76 = vadd.f32 %v69, 1.0
    %v77 = vlog2.pop %v76
    %v78 = vmul.f32 %v77, 0.6931472
    %v79 = vmul.f32 -0.5, %v69
    %v80 = vadd.f32 %v79, 1.0
    %v81 = vmul.f32 %v80, %v69
    %v82 = vand.u32 2147483647, %v69
    %vm83 = vcmp.lt.f32.partialorder %v82, 0.0004427343
    %v84 = vsel %vm83, %v81, %v78
    %v85 = vadd.f32 %v71, 1.0
    %v86 = vlog2.pop %v85
    %v87 = vmul.f32 %v86, 0.6931472
    %v88 = vmul.f32 -0.5, %v71
    %v89 = vadd.f32 %v88, 1.0
    %v90 = vmul.f32 %v89, %v71
    %v91 = vand.u32 2147483647, %v71
    %vm92 = vcmp.lt.f32.partialorder %v91, 0.0004427343
    %v93 = vsel %vm92, %v90, %v87
    %v94 = vadd.f32 %v73, 1.0
    %v95 = vlog2.pop %v94
    %v96 = vmul.f32 %v95, 0.6931472
    %v97 = vmul.f32 -0.5, %v73
    %v98 = vadd.f32 %v97, 1.0
    %v99 = vmul.f32 %v98, %v73
    %v100 = vand.u32 2147483647, %v73
    %vm101 = vcmp.lt.f32.partialorder %v100, 0.0004427343
    %v102 = vsel %vm101, %v99, %v96
    %v103 = vadd.f32 %v75, 1.0
    %v104 = vlog2.pop %v103
    %v105 = vmul.f32 %v104, 0.6931472
    %v106 = vmul.f32 -0.5, %v75
    %v107 = vadd.f32 %v106, 1.0
    %v108 = vmul.f32 %v107, %v75
    %v109 = vand.u32 2147483647, %v75
    %vm110 = vcmp.lt.f32.partialorder %v109, 0.0004427343
    %v111 = vsel %vm110, %v108, %v105
    %v112 = vadd.f32 %v56, %v84
    %v113 = vadd.f32 %v57, %v93
    %v114 = vadd.f32 %v58, %v102
    %v115 = vadd.f32 %v59, %v111
    %v116 = vsub.f32 0.0, %v112
    %v117 = vsub.f32 0.0, %v113
    %v118 = vsub.f32 0.0, %v114
    %v119 = vsub.f32 0.0, %v115
    %v120 = vmul.f32 %v116, 1.442695
    %v121 = vpow.pop %v120
    %v122 = vmul.f32 %v117, 1.442695
    %v123 = vpow.pop %v122
    %v124 = vmul.f32 %v118, 1.442695
    %v125 = vpow.pop %v124
    %v126 = vmul.f32 %v119, 1.442695
    %v127 = vpow.pop %v126
    %v128 = vsub.f32 1.0, %v121
    %v129 = vsub.f32 1.0, %v123
    %v130 = vsub.f32 1.0, %v125
    %v131 = vsub.f32 1.0, %v127
    %v132 = vmul.f32 %v128, %v128
    %v133 = vmul.f32 %v129, %v129
    %v134 = vmul.f32 %v130, %v130
    %v135 = vmul.f32 %v131, %v131
    %v136 = vmul.f32 %v132, %v112
    %v137 = vmul.f32 %v133, %v113
    %v138 = vmul.f32 %v134, %v114
    %v139 = vmul.f32 %v135, %v115
    %p140 = scmp.lt.s32.totalorder 0, 0
    // Predicated region
    $region18: #{tpu_custom_call.1} parent=1 // pred_check
      %p141 = pneg %p140
    $region19: #{tpu_custom_call.1} parent=1 // pred_check_branch
      %143 = sbr.rel (%p141) target = $region21
    $region20: #{tpu_custom_call.1} parent=1 // pred_region
      %v144 = vadd.f32 %v136, %v137
      %v145 = vadd.f32 %v144, %v138
      %v146 = vadd.f32 %v145, %v139
      %147 = vst [vmem:[#allocation7] sm:$0xff] %v146
    $region21: #{tpu_custom_call.1} parent=1 // pred_fallthru
      _
    %p148 = scmp.eq.s32.totalorder 0, 0
    // Predicated region
    $region22: #{tpu_custom_call.1} parent=1 // pred_check
      %p149 = pneg %p148
    $region23: #{tpu_custom_call.1} parent=1 // pred_check_branch
      %151 = sbr.rel (%p149) target = $region25
    $region24: #{tpu_custom_call.1} parent=1 // pred_region
      %s152 = smul.u32 0, 4096
      %v153 = vlaneseq
      %v154 = vshrl.u32 %v153, 7
      %v155 = vadd.s32 %v154, 8
      %v156 = vadd.s32 %v154, 16
      %v157 = vadd.s32 %v154, 24
      %v158 = vlaneseq
      %v159 = vand.u32 %v158, 127
      %v160 = vmul.u32 %v154, 128
      %v161 = vmul.u32 %v155, 128
      %v162 = vmul.u32 %v156, 128
      %v163 = vmul.u32 %v157, 128
      %v164 = vstv %s152
      %v165 = vadd.s32 %v164, %v160
      %v166 = vadd.s32 %v164, %v161
      %v167 = vadd.s32 %v164, %v162
      %v168 = vadd.s32 %v164, %v163
      %v169 = vadd.s32 %v165, %v159
      %v170 = vadd.s32 %v166, %v159
      %v171 = vadd.s32 %v167, %v159
      %v172 = vadd.s32 %v168, %v159
      %vm173 = vcmp.lt.s32.totalorder %v169, 2048
      %vm174 = vcmp.lt.s32.totalorder %v170, 2048
      %vm175 = vcmp.lt.s32.totalorder %v171, 2048
      %vm176 = vcmp.lt.s32.totalorder %v172, 2048
      %v177 = vsel %vm173, %v136, 0.0
      %v178 = vsel %vm174, %v137, 0.0
      %v179 = vsel %vm175, %v138, 0.0
      %v180 = vsel %vm176, %v139, 0.0
      %v181 = vadd.f32 %v177, %v178
      %v182 = vadd.f32 %v181, %v179
      %v183 = vadd.f32 %v182, %v180
      %184 = vst [vmem:[#allocation7] sm:$0xff] %v183
    $region25: #{tpu_custom_call.1} parent=1 // pred_fallthru
      _
    // Predicated region
    $region26: #{tpu_custom_call.1} parent=1 // pred_check
      _
    $region27: #{tpu_custom_call.1} parent=1 // pred_check_branch
      %186 = sbr.rel (0) target = $region29
    $region28: #{tpu_custom_call.1} parent=1 // pred_region
      %s188 = ssub.s32 128, 128
      %189 = vsyncadd [#allocation4], %s188
      %s191 = sshll.u32 [#allocation7], 4
      %s192 = int_to_ptr.vmem [resolvable:$true] %s191
      %194 = dma.vmem_to_hbm [thread:$0]  %s192, 128, %s2, [#allocation4]
    $region29: #{tpu_custom_call.1} parent=1 // pred_fallthru
      _
    // Predicated region
    $region30: #{tpu_custom_call.1} parent=1 // pred_check
      _
    $region31: #{tpu_custom_call.1} parent=1 // pred_check_branch
      %196 = sbr.rel (0) target = $region33
    $region32: #{tpu_custom_call.1} parent=1 // pred_region
      %197 = dma.done [#allocation4], 128
    $region33: #{tpu_custom_call.1} parent=1 // pred_fallthru
      _
    %198 = vsyncpa [#allocation3], 1
    %199 = vsyncpa [#allocation6], 1
    %200 = vsyncpa [#allocation4], 1

</llo_original>
